<compile_context>
chip_gen: v5e
topology: v5e:2x2
jax: 0.10.0
libtpu: 0.0.40
codegen_flags: <defaults>
</compile_context>

<pallas_src>
import jax
import jax.numpy as jnp
from jax import lax
from jax.experimental import pallas as pl
from jax.experimental.pallas import tpu as pltpu


_TARGET_BLOCK_ELEMS = 1 << 21  # ~2M elements -> 8 MiB per f32 input block


def _make_dse_kernel(block_rows, acc_rows, lane, rows_valid, need_mask):
    groups = block_rows // acc_rows

    def kernel(x_ref, t_ref, o_ref):
        # Cast each operand to f32 BEFORE subtracting (avoids low-precision
        # cancellation for bf16/fp16 inputs).
        x = x_ref[...].astype(jnp.float32)
        t = t_ref[...].astype(jnp.float32)
        d = x - t
        sq = d * d
        if need_mask:
            # The last grid step can hang past the end of the (rows, lane)
            # array; whatever gets loaded there is garbage, so zero it out.
            row0 = pl.program_id(0) * block_rows
            row_ids = row0 + lax.broadcasted_iota(jnp.int32, (block_rows, lane), 0)
            sq = jnp.where(row_ids < rows_valid, sq, 0.0)
        # Reduce only across vreg-rows (elementwise VPU adds, no cross-lane /
        # XLU work), leaving a lane/sublane-dense (acc_rows, lane) partial sum.
        o_ref[...] = sq.reshape(groups, acc_rows, lane).sum(axis=0)

    return kernel


def dse(input_arr: jax.Array, target_arr: jax.Array, *, max_block_rows=None) -> jax.Array:
    """Equivalent of DSE.forward: mean over batch of per-sample sum((x-t)^2)."""
    assert input_arr.shape == target_arr.shape
    b = input_arr.shape[0]
    total = input_arr.size

    xf = input_arr.reshape(-1)
    tf = target_arr.reshape(-1)

    # Pick a lane width that divides the flat size if possible (no pad copy).
    lane = None
    for cand in (512, 256, 128):
        if total % cand == 0:
            lane = cand
            break
    if lane is None:
        # TODO(synk): replace this pad (extra HBM copy of both inputs) with
        # in-kernel element-level masking of the ragged tail.
        lane = 128
        pad = (-total) % lane
        xf = jnp.pad(xf, (0, pad))
        tf = jnp.pad(tf, (0, pad))
    rows = xf.size // lane
    x2 = xf.reshape(rows, lane)
    t2 = tf.reshape(rows, lane)

    # Block sizing: sublane-aligned, multi-MiB blocks; 2 inputs x 2 buffers
    # x block stays well inside the explicit 48 MiB scoped-VMEM limit (fits
    # v7x's 64 MiB physical with headroom, trivially fits v5e/v6e's 128 MiB).
    if rows < 8:
        block_rows = rows
        acc_rows = rows
    else:
        target_rows = max(8, (_TARGET_BLOCK_ELEMS // lane) // 8 * 8)
        if max_block_rows is not None:
            target_rows = min(target_rows, max(8, (max_block_rows // 8) * 8))
        block_rows = min(target_rows, (rows // 8) * 8)
        acc_rows = 8
    num_blocks = pl.cdiv(rows, block_rows)
    need_mask = (rows % block_rows) != 0

    kernel = _make_dse_kernel(block_rows, acc_rows, lane, rows, need_mask)

    itemsize = jnp.dtype(input_arr.dtype).itemsize
    cost = pl.CostEstimate(
        flops=3 * total,
        transcendentals=0,
        bytes_accessed=2 * total * itemsize + num_blocks * acc_rows * lane * 4,
    )

    partials = pl.pallas_call(
        kernel,
        out_shape=jax.ShapeDtypeStruct((num_blocks * acc_rows, lane), jnp.float32),
        grid_spec=pl.GridSpec(
            grid=(num_blocks,),
            in_specs=[
                pl.BlockSpec((block_rows, lane), lambda k: (k, 0)),
                pl.BlockSpec((block_rows, lane), lambda k: (k, 0)),
            ],
            out_specs=pl.BlockSpec((acc_rows, lane), lambda k: (k, 0)),
        ),
        compiler_params=pltpu.CompilerParams(
            dimension_semantics=("parallel",),
            vmem_limit_bytes=48 * 1024 * 1024,
        ),
        cost_estimate=cost,
    )(x2, t2)

    # Tiny final reduction of the per-block partial sums + divide by batch.
    return (jnp.sum(partials) / jnp.float32(b)).astype(input_arr.dtype)


if __name__ == "__main__":
    key = jax.random.PRNGKey(0)
    k1, k2, k3, k4 = jax.random.split(key, 4)

    # Primary example: NCHW-style inputs as the module implies.
    x = jax.random.normal(k1, (2, 4, 16, 16), dtype=jnp.float32)
    t = jax.random.normal(k2, (2, 4, 16, 16), dtype=jnp.float32)
    out = jax.block_until_ready(dse(x, t))
    ref = jnp.mean(jnp.sum((x - t) ** 2, axis=tuple(range(1, x.ndim))))
    assert jnp.allclose(out, ref, rtol=1e-5, atol=1e-5), (out, ref)

    # Odd-shaped case: exercises the pad fallback, multi-block parallel grid,
    # and the ragged-final-block row mask.
    x2 = jax.random.normal(k3, (2, 3, 37, 41), dtype=jnp.float32)
    t2 = jax.random.normal(k4, (2, 3, 37, 41), dtype=jnp.float32)
    out2 = jax.block_until_ready(dse(x2, t2, max_block_rows=32))
    ref2 = jnp.mean(jnp.sum((x2 - t2) ** 2, axis=tuple(range(1, x2.ndim))))
    assert jnp.allclose(out2, ref2, rtol=1e-5, atol=1e-5), (out2, ref2)

    print("KERNEL_OK")
</pallas_src>

<mosaic_0001>
module attributes {stable_mosaic.version = 11 : i64} {
  func.func @kernel(%arg0: i32, %arg1: memref<4x512xf32, #tpu.memory_space<vmem>>, %arg2: memref<4x512xf32, #tpu.memory_space<vmem>>, %arg3: memref<4x512xf32, #tpu.memory_space<vmem>>) attributes {dimension_semantics = [#tpu.dimension_semantics<parallel>], iteration_bounds = array<i64: 1>, scalar_prefetch = 0 : i64, scratch_operands = 0 : i64, tpu.core_type = #tpu.core_type<tc>, window_params = [{transform_indices = @transform_0, window_bounds = array<i64: 4, 512>}, {transform_indices = @transform_1, window_bounds = array<i64: 4, 512>}, {transform_indices = @transform_2, window_bounds = array<i64: 4, 512>}]} {
    %c0 = arith.constant 0 : index
    %c0_0 = arith.constant 0 : index
    %0 = vector.load %arg1[%c0, %c0_0] : memref<4x512xf32, #tpu.memory_space<vmem>>, vector<4x512xf32>
    %c0_1 = arith.constant 0 : index
    %c0_2 = arith.constant 0 : index
    %1 = vector.load %arg2[%c0_1, %c0_2] : memref<4x512xf32, #tpu.memory_space<vmem>>, vector<4x512xf32>
    %2 = arith.subf %0, %1 : vector<4x512xf32>
    %3 = arith.mulf %2, %2 : vector<4x512xf32>
    %4 = vector.shape_cast %3 : vector<4x512xf32> to vector<1x4x512xf32>
    %cst = arith.constant dense<0.000000e+00> : vector<4x512xf32>
    %5 = vector.multi_reduction <add>, %4, %cst [0] : vector<1x4x512xf32> to vector<4x512xf32>
    %c0_3 = arith.constant 0 : index
    %c0_4 = arith.constant 0 : index
    %6 = vector.load %arg3[%c0_3, %c0_4] : memref<4x512xf32, #tpu.memory_space<vmem>>, vector<4x512xf32>
    tpu.vector_store %arg3[%c0_3, %c0_4], %5 {strides = array<i32>} : memref<4x512xf32, #tpu.memory_space<vmem>>, vector<4x512xf32>,
    return
  }
  func.func @transform_0(%arg0: i32) -> (i32, i32) {
    %c0_i32 = arith.constant 0 : i32
    %c0_i32_0 = arith.constant 0 : i32
    return %arg0, %c0_i32 : i32, i32
  }
  func.func @transform_1(%arg0: i32) -> (i32, i32) {
    %c0_i32 = arith.constant 0 : i32
    %c0_i32_0 = arith.constant 0 : i32
    return %arg0, %c0_i32 : i32, i32
  }
  func.func @transform_2(%arg0: i32) -> (i32, i32) {
    %c0_i32 = arith.constant 0 : i32
    %c0_i32_0 = arith.constant 0 : i32
    return %arg0, %c0_i32 : i32, i32
  }
}

</mosaic_0001>

<llo_original>
// kernel: tpu_custom_call.1
$region0: #{tpu_custom_call.1}
  #allocation0 [shape = 'u32[]', space=smem, size = 0x4, offset = 0x4, fixed_abs, tag = 'smem constant byte address 0x4 - core index']
  #allocation1 [shape = 'u32[72,128]{1,0:T(1,128)}', space=vmem, size = 0x9000, scoped, tag = 'internal scratch']
  %s0 = inlined_call_operand.hbm [shape: f32[4,512], index: 0, kind: input, shape index: {}]
  %s1 = inlined_call_operand.hbm [shape: f32[4,512], index: 1, kind: input, shape index: {}]
  %s2 = inlined_call_operand.hbm [shape: f32[4,512], index: 2, kind: output, shape index: {}]
  %s3 = sld [smem:[#allocation0]]
  $region26: #{tpu_custom_call.1} parent=0
    _
  %s5 = ssub.s32 1, %s3
  %s6 = scalar_select 0, %s5, %s3
  $region1: #{tpu_custom_call.1} parent=0
    #allocation2 [shape = 'u8[8192]{0}', space=vmem, size = 0x2000, scoped, tag = 'input window, operand 0, single buffered']
    #allocation3 [shape = 's32[1]{0}', space=sflag, size = 0x4, scoped, tag = 'scoped memory for tpu_custom_call.1']
    #allocation4 [shape = 's32[1]{0}', space=sflag, size = 0x4, scoped, tag = 'scoped memory for tpu_custom_call.1']
    #allocation5 [shape = 'u8[8192]{0}', space=vmem, size = 0x2000, scoped, tag = 'input window, operand 1, single buffered']
    #allocation6 [shape = 's32[1]{0}', space=sflag, size = 0x4, scoped, tag = 'scoped memory for tpu_custom_call.1']
    #allocation7 [shape = 'u8[8192]{0}', space=vmem, size = 0x2000, scoped, tag = 'output window, operand 0, single buffered']
    %7 = vsyncpa [#allocation3], 0
    %8 = vsyncpa [#allocation6], 0
    %9 = vsyncpa [#allocation4], 0
    // Predicated region
    $region2: #{tpu_custom_call.1} parent=1 // pred_check
      _
    $region3: #{tpu_custom_call.1} parent=1 // pred_check_branch
      %11 = sbr.rel (0) target = $region5
    $region4: #{tpu_custom_call.1} parent=1 // pred_region
      %13 = vsyncadd [#allocation3], 0
      %s15 = sshll.u32 %s0, 4
      %s16 = int_to_ptr.hbm [resolvable:$true] %s15
      %s17 = sshll.u32 [#allocation2], 4
      %s18 = int_to_ptr.vmem [resolvable:$true] %s17
      %20 = dma.hbm_to_vmem [thread:$0]  %s16, 256, %s18, [#allocation3]
    $region5: #{tpu_custom_call.1} parent=1 // pred_fallthru
      _
    // Predicated region
    $region6: #{tpu_custom_call.1} parent=1 // pred_check
      _
    $region7: #{tpu_custom_call.1} parent=1 // pred_check_branch
      %22 = sbr.rel (0) target = $region9
    $region8: #{tpu_custom_call.1} parent=1 // pred_region
      %24 = vsyncadd [#allocation6], 0
      %s26 = sshll.u32 %s1, 4
      %s27 = int_to_ptr.hbm [resolvable:$true] %s26
      %s28 = sshll.u32 [#allocation5], 4
      %s29 = int_to_ptr.vmem [resolvable:$true] %s28
      %31 = dma.hbm_to_vmem [thread:$0]  %s27, 256, %s29, [#allocation6]
    $region9: #{tpu_custom_call.1} parent=1 // pred_fallthru
      _
    // Predicated region
    $region10: #{tpu_custom_call.1} parent=1 // pred_check
      _
    $region11: #{tpu_custom_call.1} parent=1 // pred_check_branch
      %33 = sbr.rel (0) target = $region13
    $region12: #{tpu_custom_call.1} parent=1 // pred_region
      %35 = dma.done [#allocation3], 256
    $region13: #{tpu_custom_call.1} parent=1 // pred_fallthru
      _
    // Predicated region
    $region14: #{tpu_custom_call.1} parent=1 // pred_check
      _
    $region15: #{tpu_custom_call.1} parent=1 // pred_check_branch
      %37 = sbr.rel (0) target = $region17
    $region16: #{tpu_custom_call.1} parent=1 // pred_region
      %39 = dma.done [#allocation6], 256
    $region17: #{tpu_custom_call.1} parent=1 // pred_fallthru
      _
    %v40 = vld [vmem:[#allocation2] sm:$0xff]
    %v41 = vld [vmem:[#allocation2 + $0x8] sm:$0xff]
    %v42 = vld [vmem:[#allocation5] sm:$0xff]
    %v43 = vld [vmem:[#allocation5 + $0x8] sm:$0xff]
    %v44 = vsub.f32 %v40, %v42
    %v45 = vsub.f32 %v41, %v43
    %v46 = vmul.f32 %v44, %v44
    %v47 = vmul.f32 %v45, %v45
    %v48 = vadd.f32 %v46, 0.0
    %v49 = vadd.f32 %v47, 0.0
    %50 = vst [vmem:[#allocation7] sm:$0xff] %v48
    %51 = vst [vmem:[#allocation7 + $0x8] sm:$0xff] %v49
    // Predicated region
    $region18: #{tpu_custom_call.1} parent=1 // pred_check
      _
    $region19: #{tpu_custom_call.1} parent=1 // pred_check_branch
      %53 = sbr.rel (0) target = $region21
    $region20: #{tpu_custom_call.1} parent=1 // pred_region
      %55 = vsyncadd [#allocation4], 0
      %s57 = sshll.u32 [#allocation7], 4
      %s58 = int_to_ptr.vmem [resolvable:$true] %s57
      %s59 = sshll.u32 %s2, 4
      %s60 = int_to_ptr.hbm [resolvable:$true] %s59
      %62 = dma.vmem_to_hbm [thread:$0]  %s58, 256, %s60, [#allocation4]
    $region21: #{tpu_custom_call.1} parent=1 // pred_fallthru
      _
    // Predicated region
    $region22: #{tpu_custom_call.1} parent=1 // pred_check
      _
    $region23: #{tpu_custom_call.1} parent=1 // pred_check_branch
      %64 = sbr.rel (0) target = $region25
    $region24: #{tpu_custom_call.1} parent=1 // pred_region
      %66 = dma.done [#allocation4], 256
    $region25: #{tpu_custom_call.1} parent=1 // pred_fallthru
      _
    %67 = vsyncpa [#allocation3], 1
    %68 = vsyncpa [#allocation6], 1
    %69 = vsyncpa [#allocation4], 1

</llo_original>
